<compile_context>
chip_gen: v5e
topology: v5e:2x2
jax: 0.10.0
libtpu: 0.0.40
codegen_flags: <defaults>
</compile_context>

<pallas_src>
import functools

import jax
import jax.numpy as jnp
from jax import lax
from jax.experimental import pallas as pl
from jax.experimental.pallas import tpu as pltpu

OUT_PAD = 128  # lane-dense fused-head width: [policy logits | value | zero pad]


def _globalnet_kernel(x_ref, w0_ref, b0_ref, wh_ref, bh_ref, out_ref, *, a_dim):
    x = x_ref[...]                                                   # (BM, s_dim)

    # fc0 + ReLU
    h = jnp.dot(x, w0_ref[...], preferred_element_type=jnp.float32) + b0_ref[...]
    h = jnp.maximum(h, 0.0)                                          # (BM, h_dim)

    # fused policy+value head: a single MXU matmul into a 128-lane slab
    y = jnp.dot(h, wh_ref[...], preferred_element_type=jnp.float32) + bh_ref[...]

    lane = lax.broadcasted_iota(jnp.int32, y.shape, 1)
    is_p = lane < a_dim           # real policy-logit lanes
    is_v = lane == a_dim          # value lane

    # softmax over only the real action lanes (padding excluded)
    m = jnp.max(jnp.where(is_p, y, -jnp.inf), axis=-1, keepdims=True)
    e = jnp.where(is_p, jnp.exp(y - m), 0.0)
    inv = pl.reciprocal(jnp.sum(e, axis=-1, keepdims=True), approx=False)
    probs = e * inv

    # lane-dense full-vreg store: [probs | value | zeros]
    out_ref[...] = jnp.where(is_v, y, probs)


def init_params(key, s_dim, h_dim, a_dim):
    """PyTorch-style uniform(+/- 1/sqrt(fan_in)) init; weights already (in, out)."""
    ks = jax.random.split(key, 6)

    def uniform(k, shape, fan_in):
        bound = 1.0 / jnp.sqrt(jnp.float32(fan_in))
        return jax.random.uniform(k, shape, jnp.float32, -bound, bound)

    w0 = uniform(ks[0], (s_dim, h_dim), s_dim)
    b0 = uniform(ks[1], (h_dim,), s_dim)
    wp = uniform(ks[2], (h_dim, a_dim), h_dim)
    bp = uniform(ks[3], (a_dim,), h_dim)
    wv = uniform(ks[4], (h_dim, 1), h_dim)
    bv = uniform(ks[5], (1,), h_dim)
    return (w0, b0, wp, bp, wv, bv)


def pack_params(params):
    """One-time packing: fused 128-lane head weights/bias + 2-D fc0 bias."""
    w0, b0, wp, bp, wv, bv = params
    s_dim, h_dim = w0.shape
    a_dim = wp.shape[1]
    assert a_dim + 1 <= OUT_PAD

    wh = jnp.zeros((h_dim, OUT_PAD), jnp.float32)
    wh = wh.at[:, :a_dim].set(wp.astype(jnp.float32))
    wh = wh.at[:, a_dim].set(wv[:, 0].astype(jnp.float32))

    bh = jnp.zeros((1, OUT_PAD), jnp.float32)
    bh = bh.at[0, :a_dim].set(bp.astype(jnp.float32))
    bh = bh.at[0, a_dim].set(bv[0].astype(jnp.float32))

    return {
        "w0": w0.astype(jnp.float32),
        "b0": b0.reshape(1, h_dim).astype(jnp.float32),
        "wh": wh,
        "bh": bh,
        "a_dim": int(a_dim),
        "s_dim": int(s_dim),
    }


def _round_up(x, m):
    return ((x + m - 1) // m) * m


def globalnet_forward_batched(states, packed):
    """states: (B, s_dim) f32.  Returns (probs (B, a_dim), values (B, 1))."""
    a_dim = packed["a_dim"]
    s_dim = packed["s_dim"]
    B = states.shape[0]

    bm = min(128, _round_up(B, 8))            # batch tile, >= 8 sublanes
    b_pad = _round_up(B, bm)
    x = states.astype(jnp.float32)
    if b_pad != B:
        x = jnp.concatenate(
            [x, jnp.zeros((b_pad - B, s_dim), jnp.float32)], axis=0)

    def full_spec(arr):
        # whole array resident in VMEM, same block for every grid step
        return pl.BlockSpec(arr.shape, lambda i: (0,) * arr.ndim)

    out = pl.pallas_call(
        functools.partial(_globalnet_kernel, a_dim=a_dim),
        out_shape=jax.ShapeDtypeStruct((b_pad, OUT_PAD), jnp.float32),
        grid=(b_pad // bm,),
        in_specs=[
            pl.BlockSpec((bm, s_dim), lambda i: (i, 0)),   # state tiles
            full_spec(packed["w0"]),
            full_spec(packed["b0"]),
            full_spec(packed["wh"]),
            full_spec(packed["bh"]),
        ],
        out_specs=pl.BlockSpec((bm, OUT_PAD), lambda i: (i, 0)),
        compiler_params=pltpu.CompilerParams(
            dimension_semantics=("parallel",)),
    )(x, packed["w0"], packed["b0"], packed["wh"], packed["bh"])

    return out[:B, :a_dim], out[:B, a_dim:a_dim + 1]


def globalnet_forward(state, packed):
    """Original GlobalNet.forward signature: state (s_dim,) -> (p (a_dim,), v (1,))."""
    p, v = globalnet_forward_batched(state.reshape(1, -1), packed)
    return p[0], v[0]


def reference_forward_batched(states, params):
    w0, b0, wp, bp, wv, bv = params
    h = jnp.maximum(states @ w0 + b0, 0.0)
    logits = h @ wp + bp
    out_p = jax.nn.softmax(logits, axis=-1)
    out_v = h @ wv + bv
    return out_p, out_v


if __name__ == "__main__":
    # CartPole-like dims: s_dim=4 observations, h_dim=32 hidden, a_dim=2 actions.
    s_dim, h_dim, a_dim = 4, 32, 2
    B = 256

    key = jax.random.PRNGKey(0)
    k_params, k_states = jax.random.split(key)
    params = init_params(k_params, s_dim, h_dim, a_dim)
    packed = pack_params(params)

    states = jax.random.normal(k_states, (B, s_dim), jnp.float32)

    # Batched path: grid of two parallel 128-row tiles.
    out_p, out_v = globalnet_forward_batched(states, packed)
    jax.block_until_ready((out_p, out_v))

    ref_p, ref_v = reference_forward_batched(states, params)
    assert out_p.shape == (B, a_dim) and out_v.shape == (B, 1)
    assert jnp.allclose(out_p, ref_p, atol=1e-5, rtol=1e-5)
    assert jnp.allclose(out_v, ref_v, atol=1e-5, rtol=1e-5)
    assert jnp.allclose(jnp.sum(out_p, axis=-1), 1.0, atol=1e-5)

    # Single-state path (original module semantics: softmax over the 1-D output).
    state = states[0]
    p1, v1 = globalnet_forward(state, packed)
    jax.block_until_ready((p1, v1))
    assert p1.shape == (a_dim,) and v1.shape == (1,)
    assert jnp.allclose(p1, ref_p[0], atol=1e-5, rtol=1e-5)
    assert jnp.allclose(v1, ref_v[0], atol=1e-5, rtol=1e-5)

    print("KERNEL_OK")
</pallas_src>

<mosaic_0001>
module attributes {stable_mosaic.version = 11 : i64} {
  func.func @_globalnet_kernel(%arg0: i32, %arg1: memref<128x4xf32, #tpu.memory_space<vmem>>, %arg2: memref<4x32xf32, #tpu.memory_space<vmem>>, %arg3: memref<1x32xf32, #tpu.memory_space<vmem>>, %arg4: memref<32x128xf32, #tpu.memory_space<vmem>>, %arg5: memref<1x128xf32, #tpu.memory_space<vmem>>, %arg6: memref<128x128xf32, #tpu.memory_space<vmem>>) attributes {dimension_semantics = [#tpu.dimension_semantics<parallel>], iteration_bounds = array<i64: 2>, scalar_prefetch = 0 : i64, scratch_operands = 0 : i64, tpu.core_type = #tpu.core_type<tc>, window_params = [{transform_indices = @transform_0, window_bounds = array<i64: 128, 4>}, {pipeline_mode = #tpu.pipeline_mode<synchronous>, transform_indices = @transform_1, window_bounds = array<i64: 4, 32>}, {pipeline_mode = #tpu.pipeline_mode<synchronous>, transform_indices = @transform_2, window_bounds = array<i64: 1, 32>}, {pipeline_mode = #tpu.pipeline_mode<synchronous>, transform_indices = @transform_3, window_bounds = array<i64: 32, 128>}, {pipeline_mode = #tpu.pipeline_mode<synchronous>, transform_indices = @transform_4, window_bounds = array<i64: 1, 128>}, {transform_indices = @transform_5, window_bounds = array<i64: 128, 128>}]} {
    %c0 = arith.constant 0 : index
    %c0_0 = arith.constant 0 : index
    %0 = vector.load %arg1[%c0, %c0_0] : memref<128x4xf32, #tpu.memory_space<vmem>>, vector<128x4xf32>
    %c0_1 = arith.constant 0 : index
    %c0_2 = arith.constant 0 : index
    %1 = vector.load %arg2[%c0_1, %c0_2] : memref<4x32xf32, #tpu.memory_space<vmem>>, vector<4x32xf32>
    %cst = arith.constant dense<0.000000e+00> : vector<128x32xf32>
    %2 = tpu.matmul %0, %1, %cst {dimension_numbers = #tpu.dot_dimension_numbers<[1], [0], [0], [1], [0, 0, 1, 1], [], []>} : vector<128x4xf32>, vector<4x32xf32>, vector<128x32xf32> -> vector<128x32xf32>
    %c0_3 = arith.constant 0 : index
    %c0_4 = arith.constant 0 : index
    %3 = vector.load %arg3[%c0_3, %c0_4] : memref<1x32xf32, #tpu.memory_space<vmem>>, vector<1x32xf32>
    %4 = vector.broadcast %3 : vector<1x32xf32> to vector<128x32xf32>
    %5 = arith.addf %2, %4 : vector<128x32xf32>
    %cst_5 = arith.constant 0.000000e+00 : f32
    %6 = vector.broadcast %cst_5 : f32 to vector<128x32xf32>
    %7 = arith.maximumf %5, %6 : vector<128x32xf32>
    %c0_6 = arith.constant 0 : index
    %c0_7 = arith.constant 0 : index
    %8 = vector.load %arg4[%c0_6, %c0_7] : memref<32x128xf32, #tpu.memory_space<vmem>>, vector<32x128xf32>
    %cst_8 = arith.constant dense<0.000000e+00> : vector<128x128xf32>
    %9 = tpu.matmul %7, %8, %cst_8 {dimension_numbers = #tpu.dot_dimension_numbers<[1], [0], [0], [1], [0, 0, 1, 1], [], []>} : vector<128x32xf32>, vector<32x128xf32>, vector<128x128xf32> -> vector<128x128xf32>
    %c0_9 = arith.constant 0 : index
    %c0_10 = arith.constant 0 : index
    %10 = vector.load %arg5[%c0_9, %c0_10] : memref<1x128xf32, #tpu.memory_space<vmem>>, vector<1x128xf32>
    %11 = vector.broadcast %10 : vector<1x128xf32> to vector<128x128xf32>
    %12 = arith.addf %9, %11 : vector<128x128xf32>
    %13 = tpu.iota {dimensions = array<i32: 1>} : vector<128x128xi32>
    %c2_i32 = arith.constant 2 : i32
    %14 = vector.broadcast %c2_i32 : i32 to vector<128x128xi32>
    %15 = arith.cmpi slt, %13, %14 : vector<128x128xi32>
    %c2_i32_11 = arith.constant 2 : i32
    %16 = vector.broadcast %c2_i32_11 : i32 to vector<128x128xi32>
    %17 = arith.cmpi eq, %13, %16 : vector<128x128xi32>
    %cst_12 = arith.constant 0xFF800000 : f32
    %18 = vector.broadcast %cst_12 : f32 to vector<128x128xf32>
    %19 = arith.select %15, %12, %18 : vector<128x128xi1>, vector<128x128xf32>
    %cst_13 = arith.constant dense<0xFF800000> : vector<128xf32>
    %20 = vector.multi_reduction <maximumf>, %19, %cst_13 [1] : vector<128x128xf32> to vector<128xf32>
    %21 = vector.shape_cast %20 : vector<128xf32> to vector<128x1xf32>
    %22 = vector.broadcast %21 : vector<128x1xf32> to vector<128x128xf32>
    %23 = arith.subf %12, %22 : vector<128x128xf32>
    %24 = math.exp %23 : vector<128x128xf32>
    %cst_14 = arith.constant 0.000000e+00 : f32
    %25 = vector.broadcast %cst_14 : f32 to vector<128x128xf32>
    %26 = arith.select %15, %24, %25 : vector<128x128xi1>, vector<128x128xf32>
    %cst_15 = arith.constant dense<0.000000e+00> : vector<128xf32>
    %27 = vector.multi_reduction <add>, %26, %cst_15 [1] : vector<128x128xf32> to vector<128xf32>
    %28 = vector.shape_cast %27 : vector<128xf32> to vector<128x1xf32>
    %29 = tpu.reciprocal %28 : vector<128x1xf32> -> vector<128x1xf32>
    %30 = vector.broadcast %29 : vector<128x1xf32> to vector<128x128xf32>
    %31 = arith.mulf %26, %30 : vector<128x128xf32>
    %32 = arith.select %17, %12, %31 : vector<128x128xi1>, vector<128x128xf32>
    %c0_16 = arith.constant 0 : index
    %c0_17 = arith.constant 0 : index
    %33 = vector.load %arg6[%c0_16, %c0_17] : memref<128x128xf32, #tpu.memory_space<vmem>>, vector<128x128xf32>
    tpu.vector_store %arg6[%c0_16, %c0_17], %32 {strides = array<i32>} : memref<128x128xf32, #tpu.memory_space<vmem>>, vector<128x128xf32>,
    return
  }
  func.func @transform_0(%arg0: i32) -> (i32, i32) {
    %c0_i32 = arith.constant 0 : i32
    %c0_i32_0 = arith.constant 0 : i32
    return %arg0, %c0_i32 : i32, i32
  }
  func.func @transform_1(%arg0: i32) -> (i32, i32) {
    %c0_i32 = arith.constant 0 : i32
    %c0_i32_0 = arith.constant 0 : i32
    %c0_i32_1 = arith.constant 0 : i32
    return %c0_i32, %c0_i32_0 : i32, i32
  }
  func.func @transform_2(%arg0: i32) -> (i32, i32) {
    %c0_i32 = arith.constant 0 : i32
    %c0_i32_0 = arith.constant 0 : i32
    %c0_i32_1 = arith.constant 0 : i32
    return %c0_i32, %c0_i32_0 : i32, i32
  }
  func.func @transform_3(%arg0: i32) -> (i32, i32) {
    %c0_i32 = arith.constant 0 : i32
    %c0_i32_0 = arith.constant 0 : i32
    %c0_i32_1 = arith.constant 0 : i32
    return %c0_i32, %c0_i32_0 : i32, i32
  }
  func.func @transform_4(%arg0: i32) -> (i32, i32) {
    %c0_i32 = arith.constant 0 : i32
    %c0_i32_0 = arith.constant 0 : i32
    %c0_i32_1 = arith.constant 0 : i32
    return %c0_i32, %c0_i32_0 : i32, i32
  }
  func.func @transform_5(%arg0: i32) -> (i32, i32) {
    %c0_i32 = arith.constant 0 : i32
    %c0_i32_0 = arith.constant 0 : i32
    return %arg0, %c0_i32 : i32, i32
  }
}

</mosaic_0001>

<llo_original>
// kernel: tpu_custom_call.1
$region0: #{tpu_custom_call.1}
  #allocation0 [shape = 'u32[]', space=smem, size = 0x4, offset = 0x4, fixed_abs, tag = 'smem constant byte address 0x4 - core index']
  #allocation1 [shape = 'u32[72,128]{1,0:T(1,128)}', space=vmem, size = 0x9000, scoped, tag = 'internal scratch']
  %s0 = inlined_call_operand.vmem [shape: f32[256,4], index: 0, kind: input, shape index: {}]
  %s1 = inlined_call_operand.vmem [shape: f32[4,32], index: 1, kind: input, shape index: {}]
  %s2 = inlined_call_operand.vmem [shape: f32[1,32], index: 2, kind: input, shape index: {}]
  %s3 = inlined_call_operand.vmem [shape: f32[32,128], index: 3, kind: input, shape index: {}]
  %s4 = inlined_call_operand.vmem [shape: f32[1,128], index: 4, kind: input, shape index: {}]
  %s5 = inlined_call_operand.hbm [shape: f32[256,128], index: 5, kind: output, shape index: {}]
  %s6 = sld [smem:[#allocation0]]
  $region53: #{tpu_custom_call.1} parent=0
    _
  %s8 = ssub.s32 1, %s6
  %s9 = scalar_select 0, %s8, %s6
  $region1: #{tpu_custom_call.1} parent=0
    #allocation2 [shape = 'u8[131072]{0}', space=vmem, size = 0x20000, scoped, tag = 'output window, operand 0']
    #allocation3 [shape = 's32[2]{0}', space=sflag, size = 0x8, scoped, tag = 'scoped memory for tpu_custom_call.1']
    %10 = vsyncpa [#allocation3], 0
    %s11 = scalar_lea.sflag [#allocation3], 1
    %12 = vsyncpa %s11, 0
    loop: start=0, step=1, limit=4
    $region2: #{tpu_custom_call.1} parent=1 // loop_pre_header
      _
    $region3: #{tpu_custom_call.1} parent=1 // loop_header
      %s14 = sphi 0, %s18
      %p15 = scmp.ge.s32.totalorder %s14, 4
      %s24 = sphi 0, %s26
      %s27 = sphi 0, %s24
      %s28 = sphi 0, %s27
      %s44 = sphi 0, %s28
      %s48 = sphi 0, %s48
      %s50 = sphi 0, %s48
      %s51 = sphi 0, %s50
      %s65 = sphi 0, %s51
      %s69 = sphi 0, %s69
      %s71 = sphi 0, %s69
      %s72 = sphi 0, %s71
      %s86 = sphi 0, %s72
      %s90 = sphi 0, %s90
      %s92 = sphi 0, %s90
      %s93 = sphi 0, %s92
      %s107 = sphi 0, %s93
      %s111 = sphi 0, %s111
      %s113 = sphi 0, %s111
      %s114 = sphi 0, %s113
      %s128 = sphi 0, %s114
      %s134 = sphi 0, %s136
      %s137 = sphi 0, %s134
      %s138 = sphi 0, %s137
      %s154 = sphi 0, %s138
    $region4: #{tpu_custom_call.1} parent=1 // loop_header_branch
      %17 = sbr.rel (%p15) target = $region8
    $region5: #{tpu_custom_call.1} parent=1 // loop_body
      %s19 = ssub.s32 %s14, 1
      %s20 = ssub.s32 %s14, 2
      %s21 = sadd.s32 %s14, 1
      %s22 = ssub.s32 %s14, %s21
      %p23 = scmp.eq.s32.totalorder %s22, 0
      %s25 = sadd.s32 %s24, 1
      %s26 = scalar_select %p23, %s24, %s25
      %p29 = pneg %p23
      %p30 = scmp.eq.s32.totalorder %s14, 1
      %p31 = por %p29, %p30
      %p32 = scmp.ne.s32.totalorder %s24, %s27
      %p33 = scmp.eq.s32.totalorder %s14, 0
      %p34 = por %p32, %p33
      %p35 = scmp.ne.s32.totalorder %s24, %s27
      %p36 = scmp.eq.s32.totalorder %s19, 1
      %p37 = por %p35, %p36
      %p38 = scmp.ne.s32.totalorder %s27, %s28
      %p39 = scmp.eq.s32.totalorder %s19, 0
      %p40 = por %p38, %p39
      %p41 = scmp.ne.s32.totalorder %s27, %s28
      %p42 = scmp.eq.s32.totalorder %s20, 1
      %p43 = por %p41, %p42
      %p45 = scmp.ne.s32.totalorder %s28, %s44
      %p46 = scmp.eq.s32.totalorder %s20, 0
      %p47 = por %p45, %p46
      %s49 = sadd.s32 %s48, 1
      %p52 = scmp.eq.s32.totalorder %s14, 1
      %p53 = scmp.ne.s32.totalorder %s48, %s50
      %p54 = scmp.eq.s32.totalorder %s14, 0
      %p55 = por %p53, %p54
      %p56 = scmp.ne.s32.totalorder %s48, %s50
      %p57 = scmp.eq.s32.totalorder %s19, 1
      %p58 = por %p56, %p57
      %p59 = scmp.ne.s32.totalorder %s50, %s51
      %p60 = scmp.eq.s32.totalorder %s19, 0
      %p61 = por %p59, %p60
      %p62 = scmp.ne.s32.totalorder %s50, %s51
      %p63 = scmp.eq.s32.totalorder %s20, 1
      %p64 = por %p62, %p63
      %p66 = scmp.ne.s32.totalorder %s51, %s65
      %p67 = scmp.eq.s32.totalorder %s20, 0
      %p68 = por %p66, %p67
      %s70 = sadd.s32 %s69, 1
      %p73 = scmp.eq.s32.totalorder %s14, 1
      %p74 = scmp.ne.s32.totalorder %s69, %s71
      %p75 = scmp.eq.s32.totalorder %s14, 0
      %p76 = por %p74, %p75
      %p77 = scmp.ne.s32.totalorder %s69, %s71
      %p78 = scmp.eq.s32.totalorder %s19, 1
      %p79 = por %p77, %p78
      %p80 = scmp.ne.s32.totalorder %s71, %s72
      %p81 = scmp.eq.s32.totalorder %s19, 0
      %p82 = por %p80, %p81
      %p83 = scmp.ne.s32.totalorder %s71, %s72
      %p84 = scmp.eq.s32.totalorder %s20, 1
      %p85 = por %p83, %p84
      %p87 = scmp.ne.s32.totalorder %s72, %s86
      %p88 = scmp.eq.s32.totalorder %s20, 0
      %p89 = por %p87, %p88
      %s91 = sadd.s32 %s90, 1
      %p94 = scmp.eq.s32.totalorder %s14, 1
      %p95 = scmp.ne.s32.totalorder %s90, %s92
      %p96 = scmp.eq.s32.totalorder %s14, 0
      %p97 = por %p95, %p96
      %p98 = scmp.ne.s32.totalorder %s90, %s92
      %p99 = scmp.eq.s32.totalorder %s19, 1
      %p100 = por %p98, %p99
      %p101 = scmp.ne.s32.totalorder %s92, %s93
      %p102 = scmp.eq.s32.totalorder %s19, 0
      %p103 = por %p101, %p102
      %p104 = scmp.ne.s32.totalorder %s92, %s93
      %p105 = scmp.eq.s32.totalorder %s20, 1
      %p106 = por %p104, %p105
      %p108 = scmp.ne.s32.totalorder %s93, %s107
      %p109 = scmp.eq.s32.totalorder %s20, 0
      %p110 = por %p108, %p109
      %s112 = sadd.s32 %s111, 1
      %p115 = scmp.eq.s32.totalorder %s14, 1
      %p116 = scmp.ne.s32.totalorder %s111, %s113
      %p117 = scmp.eq.s32.totalorder %s14, 0
      %p118 = por %p116, %p117
      %p119 = scmp.ne.s32.totalorder %s111, %s113
      %p120 = scmp.eq.s32.totalorder %s19, 1
      %p121 = por %p119, %p120
      %p122 = scmp.ne.s32.totalorder %s113, %s114
      %p123 = scmp.eq.s32.totalorder %s19, 0
      %p124 = por %p122, %p123
      %p125 = scmp.ne.s32.totalorder %s113, %s114
      %p126 = scmp.eq.s32.totalorder %s20, 1
      %p127 = por %p125, %p126
      %p129 = scmp.ne.s32.totalorder %s114, %s128
      %p130 = scmp.eq.s32.totalorder %s20, 0
      %p131 = por %p129, %p130
      %s132 = ssub.s32 %s14, %s21
      %p133 = scmp.eq.s32.totalorder %s132, 0
      %s135 = sadd.s32 %s134, 1
      %s136 = scalar_select %p133, %s134, %s135
      %p139 = pneg %p133
      %p140 = scmp.eq.s32.totalorder %s14, 1
      %p141 = por %p139, %p140
      %p142 = scmp.ne.s32.totalorder %s134, %s137
      %p143 = scmp.eq.s32.totalorder %s14, 0
      %p144 = por %p142, %p143
      %p145 = scmp.ne.s32.totalorder %s134, %s137
      %p146 = scmp.eq.s32.totalorder %s19, 1
      %p147 = por %p145, %p146
      %p148 = scmp.ne.s32.totalorder %s137, %s138
      %p149 = scmp.eq.s32.totalorder %s19, 0
      %p150 = por %p148, %p149
      %p151 = scmp.ne.s32.totalorder %s137, %s138
      %p152 = scmp.eq.s32.totalorder %s20, 1
      %p153 = por %p151, %p152
      %p155 = scmp.ne.s32.totalorder %s138, %s154
      %p156 = scmp.eq.s32.totalorder %s20, 0
      %p157 = por %p155, %p156
      %p158 = scmp.le.s32.totalorder 1, %s14
      %p159 = scmp.lt.s32.totalorder %s14, 3
      %p160 = pnand %p158, %p159
      %p161 = pneg %p160
      // Predicated region
      $region9: #{tpu_custom_call.1} parent=5 // pred_check
        _
      $region10: #{tpu_custom_call.1} parent=5 // pred_check_branch
        %163 = sbr.rel (%p160) target = $region12
      $region11: #{tpu_custom_call.1} parent=5 // pred_region
        %s164 = ssub.s32 %s14, 1
        // Predicated region
        $region13: #{tpu_custom_call.1} parent=11 // pred_check
          %p165 = pneg %p61
        $region14: #{tpu_custom_call.1} parent=11 // pred_check_branch
          %167 = sbr.rel (%p165) target = $region16
        $region15: #{tpu_custom_call.1} parent=11 // pred_region
          _
        $region16: #{tpu_custom_call.1} parent=11 // pred_fallthru
          _
        // Predicated region
        $region17: #{tpu_custom_call.1} parent=11 // pred_check
          %p168 = pneg %p82
        $region18: #{tpu_custom_call.1} parent=11 // pred_check_branch
          %170 = sbr.rel (%p168) target = $region20
        $region19: #{tpu_custom_call.1} parent=11 // pred_region
          _
        $region20: #{tpu_custom_call.1} parent=11 // pred_fallthru
          _
        // Predicated region
        $region21: #{tpu_custom_call.1} parent=11 // pred_check
          %p171 = pneg %p103
        $region22: #{tpu_custom_call.1} parent=11 // pred_check_branch
          %173 = sbr.rel (%p171) target = $region24
        $region23: #{tpu_custom_call.1} parent=11 // pred_region
          _
        $region24: #{tpu_custom_call.1} parent=11 // pred_fallthru
          _
        // Predicated region
        $region25: #{tpu_custom_call.1} parent=11 // pred_check
          %p174 = pneg %p124
        $region26: #{tpu_custom_call.1} parent=11 // pred_check_branch
          %176 = sbr.rel (%p174) target = $region28
        $region27: #{tpu_custom_call.1} parent=11 // pred_region
          _
        $region28: #{tpu_custom_call.1} parent=11 // pred_fallthru
          _
      $region12: #{tpu_custom_call.1} parent=5 // pred_fallthru
        _
      %p177 = scmp.lt.s32.totalorder %s14, 2
      // Predicated region
      $region29: #{tpu_custom_call.1} parent=5 // pred_check
        %p178 = pneg %p177
      $region30: #{tpu_custom_call.1} parent=5 // pred_check_branch
        %180 = sbr.rel (%p178) target = $region32
      $region31: #{tpu_custom_call.1} parent=5 // pred_region
        // Predicated region
        $region33: #{tpu_custom_call.1} parent=31 // pred_check
          %p181 = pneg %p34
        $region34: #{tpu_custom_call.1} parent=31 // pred_check_branch
          %183 = sbr.rel (%p181) target = $region36
        $region35: #{tpu_custom_call.1} parent=31 // pred_region
          %s184 = smul.u32 16, %s14
          %p185 = scmp.lt.s32.totalorder %s184, 31
          %s186 = scalar_select %p185, %s184, 31
          %s187 = smul.addr %s186, 8
          %s188 = scalar_lea.vmem %s0, %s187
          %s189 = smul.u32 16, %s14
        $region36: #{tpu_custom_call.1} parent=31 // pred_fallthru
          _
      $region32: #{tpu_custom_call.1} parent=5 // pred_fallthru
        _
      %p190 = scmp.le.s32.totalorder 1, %s14
      %p191 = scmp.lt.s32.totalorder %s14, 3
      %p192 = pnand %p190, %p191
      %p193 = pneg %p192
      // Predicated region
      $region37: #{tpu_custom_call.1} parent=5 // pred_check
        _
      $region38: #{tpu_custom_call.1} parent=5 // pred_check_branch
        %195 = sbr.rel (%p192) target = $region40
      $region39: #{tpu_custom_call.1} parent=5 // pred_region
        %s196 = ssub.s32 %s14, 1
        %s197 = smul.u32 16, %s19
        %p198 = scmp.lt.s32.totalorder %s197, 31
        %s199 = scalar_select %p198, %s197, 31
        %s200 = smul.addr %s199, 8
        %s201 = scalar_lea.vmem %s0, %s200
        %p202 = pneg %p40
        %p203 = pneg %p37
        %p204 = pneg %p61
        %p205 = pneg %p58
        %p206 = pneg %p82
        %p207 = pneg %p79
        %p208 = pneg %p103
        %p209 = pneg %p100
        %p210 = pneg %p124
        %p211 = pneg %p121
        %p212 = pneg %p150
        %p213 = pneg %p147
        %s214 = sand.u32 %s137, 1
        %s215 = scalar_lea.sflag [#allocation3], %s214
        %s216 = sand.u32 %s137, 1
        %s217 = smul.addr %s216, 128
        %s218 = scalar_lea.vmem [#allocation2], %s217
        %s219 = smul.u32 16, %s19
        %p220 = scmp.lt.s32.totalorder %s219, 31
        %s221 = scalar_select %p220, %s219, 31
        %s222 = smul.addr %s221, 8
        %s223 = scalar_lea.vmem %s0, %s222
        %s224 = smul.u32 16, %s19
        %s225 = smul.u32 16, %s19
        %v226 = vld [vmem:[%s223] sm:$0xff]
        %v227 = vld [vmem:[%s223 + $0x8] sm:$0xff]
        %v228 = vld [vmem:[%s223 + $0x10] sm:$0xff]
        %v229 = vld [vmem:[%s223 + $0x18] sm:$0xff]
        %v230 = vld [vmem:[%s223 + $0x20] sm:$0xff]
        %v231 = vld [vmem:[%s223 + $0x28] sm:$0xff]
        %v232 = vld [vmem:[%s223 + $0x30] sm:$0xff]
        %v233 = vld [vmem:[%s223 + $0x38] sm:$0xff]
        %v234 = vld [vmem:[%s223 + $0x40] sm:$0xff]
        %v235 = vld [vmem:[%s223 + $0x48] sm:$0xff]
        %v236 = vld [vmem:[%s223 + $0x50] sm:$0xff]
        %v237 = vld [vmem:[%s223 + $0x58] sm:$0xff]
        %v238 = vld [vmem:[%s223 + $0x60] sm:$0xff]
        %v239 = vld [vmem:[%s223 + $0x68] sm:$0xff]
        %v240 = vld [vmem:[%s223 + $0x70] sm:$0xff]
        %v241 = vld [vmem:[%s223 + $0x78] sm:$0xff]
        %v242 = vld [vmem:[%s1] sm:$0xf]
        %v243 = vld [vmem:[%s2] sm:$0x1]
        %v245 = vperm.slane %v243, 0
        %vm247 = vcmask 31744
        %v249 = vsel %vm247, %v226, 0
        %v252 = vsel %vm247, %v227, 0
        %v255 = vsel %vm247, %v228, 0
        %v258 = vsel %vm247, %v229, 0
        %v261 = vsel %vm247, %v230, 0
        %v264 = vsel %vm247, %v231, 0
        %v267 = vsel %vm247, %v232, 0
        %v270 = vsel %vm247, %v233, 0
        %v273 = vsel %vm247, %v234, 0
        %v276 = vsel %vm247, %v235, 0
        %v279 = vsel %vm247, %v236, 0
        %v282 = vsel %vm247, %v237, 0
        %v285 = vsel %vm247, %v238, 0
        %v288 = vsel %vm247, %v239, 0
        %v291 = vsel %vm247, %v240, 0
        %v294 = vsel %vm247, %v241, 0
        %vm296 = vcmask 1043456
        %v298 = vsel %vm296, %v242, 0
        %300 = vmatpush.msra.mxu0 0.0
        %301 = vmatpush.msra.mxu0 0.0
        %302 = vmatpush.msra.mxu0 0.0
        %303 = vmatpush.msra.mxu0 0.0
        %304 = vmatpush.msra.mxu0 0.0
        %305 = vmatpush.msra.mxu0 0.0
        %306 = vmatpush.msra.mxu0 0.0
        %307 = vmatpush.msra.mxu0 0.0
        %308 = vmatpush.msra.mxu0 0.0
        %309 = vmatpush.msra.mxu0 0.0
        %310 = vmatpush.msra.mxu0 0.0
        %311 = vmatpush.msra.mxu0 0.0
        %312 = vmatpush.msra.mxu0 0.0
        %313 = vmatpush.msra.mxu0 0.0
        %314 = vmatpush.msra.mxu0 0.0
        %315 = vmatpush.msra.mxu0 %v298
        %316 = vmatmul.f32.gmra.mxu0 %v249
        %v317 = vpop.f32.mrf.mxu0
        %v318 = vadd.f32 %v245, %v317
        %319 = vmatmul.f32.gmra.mxu0 %v252
        %v320 = vpop.f32.mrf.mxu0
        %v321 = vadd.f32 %v245, %v320
        %322 = vmatmul.f32.gmra.mxu0 %v255
        %v323 = vpop.f32.mrf.mxu0
        %v324 = vadd.f32 %v245, %v323
        %325 = vmatmul.f32.gmra.mxu0 %v258
        %v326 = vpop.f32.mrf.mxu0
        %v327 = vadd.f32 %v245, %v326
        %328 = vmatmul.f32.gmra.mxu0 %v261
        %v329 = vpop.f32.mrf.mxu0
        %v330 = vadd.f32 %v245, %v329
        %331 = vmatmul.f32.gmra.mxu0 %v264
        %v332 = vpop.f32.mrf.mxu0
        %v333 = vadd.f32 %v245, %v332
        %334 = vmatmul.f32.gmra.mxu0 %v267
        %v335 = vpop.f32.mrf.mxu0
        %v336 = vadd.f32 %v245, %v335
        %337 = vmatmul.f32.gmra.mxu0 %v270
        %v338 = vpop.f32.mrf.mxu0
        %v339 = vadd.f32 %v245, %v338
        %340 = vmatmul.f32.gmra.mxu0 %v273
        %v341 = vpop.f32.mrf.mxu0
        %v342 = vadd.f32 %v245, %v341
        %343 = vmatmul.f32.gmra.mxu0 %v276
        %v344 = vpop.f32.mrf.mxu0
        %v345 = vadd.f32 %v245, %v344
        %346 = vmatmul.f32.gmra.mxu0 %v279
        %v347 = vpop.f32.mrf.mxu0
        %v348 = vadd.f32 %v245, %v347
        %349 = vmatmul.f32.gmra.mxu0 %v282
        %v350 = vpop.f32.mrf.mxu0
        %v351 = vadd.f32 %v245, %v350
        %352 = vmatmul.f32.gmra.mxu0 %v285
        %v353 = vpop.f32.mrf.mxu0
        %v354 = vadd.f32 %v245, %v353
        %355 = vmatmul.f32.gmra.mxu0 %v288
        %v356 = vpop.f32.mrf.mxu0
        %v357 = vadd.f32 %v245, %v356
        %358 = vmatmul.f32.gmra.mxu0 %v291
        %v359 = vpop.f32.mrf.mxu0
        %v360 = vadd.f32 %v245, %v359
        %361 = vmatmul.f32.gmra.mxu0 %v294
        %v362 = vpop.f32.mrf.mxu0
        %v363 = vadd.f32 %v245, %v362
        %364 = vdwg.mxu0
        %v365 = vmax.f32 %v318, 0.0
        %v366 = vmax.f32 %v321, 0.0
        %v367 = vmax.f32 %v324, 0.0
        %v368 = vmax.f32 %v327, 0.0
        %v369 = vmax.f32 %v330, 0.0
        %v370 = vmax.f32 %v333, 0.0
        %v371 = vmax.f32 %v336, 0.0
        %v372 = vmax.f32 %v339, 0.0
        %v373 = vmax.f32 %v342, 0.0
        %v374 = vmax.f32 %v345, 0.0
        %v375 = vmax.f32 %v348, 0.0
        %v376 = vmax.f32 %v351, 0.0
        %v377 = vmax.f32 %v354, 0.0
        %v378 = vmax.f32 %v357, 0.0
        %v379 = vmax.f32 %v360, 0.0
        %v380 = vmax.f32 %v363, 0.0
        %v381 = vld [vmem:[%s3] sm:$0xff]
        %v382 = vld [vmem:[%s3 + $0x8] sm:$0xff]
        %v383 = vld [vmem:[%s3 + $0x10] sm:$0xff]
        %v384 = vld [vmem:[%s3 + $0x18] sm:$0xff]
        %v385 = vld [vmem:[%s4] sm:$0x1]
        %v387 = vperm.slane %v385, 0
        %vm389 = vcmask 261120
        %v391 = vsel %vm389, %v365, 0
        %v394 = vsel %vm389, %v366, 0
        %v397 = vsel %vm389, %v367, 0
        %v400 = vsel %vm389, %v368, 0
        %v403 = vsel %vm389, %v369, 0
        %v406 = vsel %vm389, %v370, 0
        %v409 = vsel %vm389, %v371, 0
        %v412 = vsel %vm389, %v372, 0
        %v415 = vsel %vm389, %v373, 0
        %v418 = vsel %vm389, %v374, 0
        %v421 = vsel %vm389, %v375, 0
        %v424 = vsel %vm389, %v376, 0
        %v427 = vsel %vm389, %v377, 0
        %v430 = vsel %vm389, %v378, 0
        %v433 = vsel %vm389, %v379, 0
        %v436 = vsel %vm389, %v380, 0
        %438 = vmatpush.msra.mxu0 0.0
        %439 = vmatpush.msra.mxu0 0.0
        %440 = vmatpush.msra.mxu0 0.0
        %441 = vmatpush.msra.mxu0 0.0
        %442 = vmatpush.msra.mxu0 0.0
        %443 = vmatpush.msra.mxu0 0.0
        %444 = vmatpush.msra.mxu0 0.0
        %445 = vmatpush.msra.mxu0 0.0
        %446 = vmatpush.msra.mxu0 0.0
        %447 = vmatpush.msra.mxu0 0.0
        %448 = vmatpush.msra.mxu0 0.0
        %449 = vmatpush.msra.mxu0 0.0
        %450 = vmatpush.msra.mxu0 %v384
        %451 = vmatpush.msra.mxu0 %v383
        %452 = vmatpush.msra.mxu0 %v382
        %453 = vmatpush.msra.mxu0 %v381
        %454 = vmatmul.f32.gmra.mxu0 %v391
        %v455 = vpop.f32.mrf.mxu0
        %v456 = vadd.f32 %v387, %v455
        %457 = vmatmul.f32.gmra.mxu0 %v394
        %v458 = vpop.f32.mrf.mxu0
        %v459 = vadd.f32 %v387, %v458
        %460 = vmatmul.f32.gmra.mxu0 %v397
        %v461 = vpop.f32.mrf.mxu0
        %v462 = vadd.f32 %v387, %v461
        %463 = vmatmul.f32.gmra.mxu0 %v400
        %v464 = vpop.f32.mrf.mxu0
        %v465 = vadd.f32 %v387, %v464
        %466 = vmatmul.f32.gmra.mxu0 %v403
        %v467 = vpop.f32.mrf.mxu0
        %v468 = vadd.f32 %v387, %v467
        %469 = vmatmul.f32.gmra.mxu0 %v406
        %v470 = vpop.f32.mrf.mxu0
        %v471 = vadd.f32 %v387, %v470
        %472 = vmatmul.f32.gmra.mxu0 %v409
        %v473 = vpop.f32.mrf.mxu0
        %v474 = vadd.f32 %v387, %v473
        %475 = vmatmul.f32.gmra.mxu0 %v412
        %v476 = vpop.f32.mrf.mxu0
        %v477 = vadd.f32 %v387, %v476
        %478 = vmatmul.f32.gmra.mxu0 %v415
        %v479 = vpop.f32.mrf.mxu0
        %v480 = vadd.f32 %v387, %v479
        %481 = vmatmul.f32.gmra.mxu0 %v418
        %v482 = vpop.f32.mrf.mxu0
        %v483 = vadd.f32 %v387, %v482
        %484 = vmatmul.f32.gmra.mxu0 %v421
        %v485 = vpop.f32.mrf.mxu0
        %v486 = vadd.f32 %v387, %v485
        %487 = vmatmul.f32.gmra.mxu0 %v424
        %v488 = vpop.f32.mrf.mxu0
        %v489 = vadd.f32 %v387, %v488
        %490 = vmatmul.f32.gmra.mxu0 %v427
        %v491 = vpop.f32.mrf.mxu0
        %v492 = vadd.f32 %v387, %v491
        %493 = vmatmul.f32.gmra.mxu0 %v430
        %v494 = vpop.f32.mrf.mxu0
        %v495 = vadd.f32 %v387, %v494
        %496 = vmatmul.f32.gmra.mxu0 %v433
        %v497 = vpop.f32.mrf.mxu0
        %v498 = vadd.f32 %v387, %v497
        %499 = vmatmul.f32.gmra.mxu0 %v436
        %v500 = vpop.f32.mrf.mxu0
        %v501 = vadd.f32 %v387, %v500
        %502 = vdwg.mxu0
        %v503 = vlaneseq
        %v504 = vand.u32 %v503, 127
        %vm505 = vcmp.lt.s32.totalorder %v504, 2
        %vm506 = vcmp.eq.s32.totalorder %v504, 2
        %v507 = vsel %vm505, %v456, -inf
        %v508 = vsel %vm505, %v459, -inf
        %v509 = vsel %vm505, %v462, -inf
        %v510 = vsel %vm505, %v465, -inf
        %v511 = vsel %vm505, %v468, -inf
        %v512 = vsel %vm505, %v471, -inf
        %v513 = vsel %vm505, %v474, -inf
        %v514 = vsel %vm505, %v477, -inf
        %v515 = vsel %vm505, %v480, -inf
        %v516 = vsel %vm505, %v483, -inf
        %v517 = vsel %vm505, %v486, -inf
        %v518 = vsel %vm505, %v489, -inf
        %v519 = vsel %vm505, %v492, -inf
        %v520 = vsel %vm505, %v495, -inf
        %v521 = vsel %vm505, %v498, -inf
        %v522 = vsel %vm505, %v501, -inf
        %523 = vmax.xlane.f32.xlu0 %v507
        %v524 = vpop.xlane.xlu0 %523
        %525 = vmax.xlane.f32.xlu0 %v508
        %v526 = vpop.xlane.xlu0 %525
        %527 = vmax.xlane.f32.xlu0 %v509
        %v528 = vpop.xlane.xlu0 %527
        %529 = vmax.xlane.f32.xlu0 %v510
        %v530 = vpop.xlane.xlu0 %529
        %531 = vmax.xlane.f32.xlu0 %v511
        %v532 = vpop.xlane.xlu0 %531
        %533 = vmax.xlane.f32.xlu0 %v512
        %v534 = vpop.xlane.xlu0 %533
        %535 = vmax.xlane.f32.xlu0 %v513
        %v536 = vpop.xlane.xlu0 %535
        %537 = vmax.xlane.f32.xlu0 %v514
        %v538 = vpop.xlane.xlu0 %537
        %539 = vmax.xlane.f32.xlu0 %v515
        %v540 = vpop.xlane.xlu0 %539
        %541 = vmax.xlane.f32.xlu0 %v516
        %v542 = vpop.xlane.xlu0 %541
        %543 = vmax.xlane.f32.xlu0 %v517
        %v544 = vpop.xlane.xlu0 %543
        %545 = vmax.xlane.f32.xlu0 %v518
        %v546 = vpop.xlane.xlu0 %545
        %547 = vmax.xlane.f32.xlu0 %v519
        %v548 = vpop.xlane.xlu0 %547
        %549 = vmax.xlane.f32.xlu0 %v520
        %v550 = vpop.xlane.xlu0 %549
        %551 = vmax.xlane.f32.xlu0 %v521
        %v552 = vpop.xlane.xlu0 %551
        %553 = vmax.xlane.f32.xlu0 %v522
        %v554 = vpop.xlane.xlu0 %553
        %v555 = vsub.f32 %v456, %v524
        %v556 = vsub.f32 %v459, %v526
        %v557 = vsub.f32 %v462, %v528
        %v558 = vsub.f32 %v465, %v530
        %v559 = vsub.f32 %v468, %v532
        %v560 = vsub.f32 %v471, %v534
        %v561 = vsub.f32 %v474, %v536
        %v562 = vsub.f32 %v477, %v538
        %v563 = vsub.f32 %v480, %v540
        %v564 = vsub.f32 %v483, %v542
        %v565 = vsub.f32 %v486, %v544
        %v566 = vsub.f32 %v489, %v546
        %v567 = vsub.f32 %v492, %v548
        %v568 = vsub.f32 %v495, %v550
        %v569 = vsub.f32 %v498, %v552
        %v570 = vsub.f32 %v501, %v554
        %v571 = vmul.f32 %v555, 1.442695
        %v572 = vpow.pop %v571
        %v573 = vmul.f32 %v556, 1.442695
        %v574 = vpow.pop %v573
        %v575 = vmul.f32 %v557, 1.442695
        %v576 = vpow.pop %v575
        %v577 = vmul.f32 %v558, 1.442695
        %v578 = vpow.pop %v577
        %v579 = vmul.f32 %v559, 1.442695
        %v580 = vpow.pop %v579
        %v581 = vmul.f32 %v560, 1.442695
        %v582 = vpow.pop %v581
        %v583 = vmul.f32 %v561, 1.442695
        %v584 = vpow.pop %v583
        %v585 = vmul.f32 %v562, 1.442695
        %v586 = vpow.pop %v585
        %v587 = vmul.f32 %v563, 1.442695
        %v588 = vpow.pop %v587
        %v589 = vmul.f32 %v564, 1.442695
        %v590 = vpow.pop %v589
        %v591 = vmul.f32 %v565, 1.442695
        %v592 = vpow.pop %v591
        %v593 = vmul.f32 %v566, 1.442695
        %v594 = vpow.pop %v593
        %v595 = vmul.f32 %v567, 1.442695
        %v596 = vpow.pop %v595
        %v597 = vmul.f32 %v568, 1.442695
        %v598 = vpow.pop %v597
        %v599 = vmul.f32 %v569, 1.442695
        %v600 = vpow.pop %v599
        %v601 = vmul.f32 %v570, 1.442695
        %v602 = vpow.pop %v601
        %v603 = vsel %vm505, %v572, 0.0
        %v604 = vsel %vm505, %v574, 0.0
        %v605 = vsel %vm505, %v576, 0.0
        %v606 = vsel %vm505, %v578, 0.0
        %v607 = vsel %vm505, %v580, 0.0
        %v608 = vsel %vm505, %v582, 0.0
        %v609 = vsel %vm505, %v584, 0.0
        %v610 = vsel %vm505, %v586, 0.0
        %v611 = vsel %vm505, %v588, 0.0
        %v612 = vsel %vm505, %v590, 0.0
        %v613 = vsel %vm505, %v592, 0.0
        %v614 = vsel %vm505, %v594, 0.0
        %v615 = vsel %vm505, %v596, 0.0
        %v616 = vsel %vm505, %v598, 0.0
        %v617 = vsel %vm505, %v600, 0.0
        %v618 = vsel %vm505, %v602, 0.0
        %619 = vadd.xlane.f32.xlu0 %v603
        %v620 = vpop.xlane.xlu0 %619
        %621 = vadd.xlane.f32.xlu0 %v604
        %v622 = vpop.xlane.xlu0 %621
        %623 = vadd.xlane.f32.xlu0 %v605
        %v624 = vpop.xlane.xlu0 %623
        %625 = vadd.xlane.f32.xlu0 %v606
        %v626 = vpop.xlane.xlu0 %625
        %627 = vadd.xlane.f32.xlu0 %v607
        %v628 = vpop.xlane.xlu0 %627
        %629 = vadd.xlane.f32.xlu0 %v608
        %v630 = vpop.xlane.xlu0 %629
        %631 = vadd.xlane.f32.xlu0 %v609
        %v632 = vpop.xlane.xlu0 %631
        %633 = vadd.xlane.f32.xlu0 %v610
        %v634 = vpop.xlane.xlu0 %633
        %635 = vadd.xlane.f32.xlu0 %v611
        %v636 = vpop.xlane.xlu0 %635
        %637 = vadd.xlane.f32.xlu0 %v612
        %v638 = vpop.xlane.xlu0 %637
        %639 = vadd.xlane.f32.xlu0 %v613
        %v640 = vpop.xlane.xlu0 %639
        %641 = vadd.xlane.f32.xlu0 %v614
        %v642 = vpop.xlane.xlu0 %641
        %643 = vadd.xlane.f32.xlu0 %v615
        %v644 = vpop.xlane.xlu0 %643
        %645 = vadd.xlane.f32.xlu0 %v616
        %v646 = vpop.xlane.xlu0 %645
        %647 = vadd.xlane.f32.xlu0 %v617
        %v648 = vpop.xlane.xlu0 %647
        %649 = vadd.xlane.f32.xlu0 %v618
        %v650 = vpop.xlane.xlu0 %649
        %v651 = vrcp.pop %v620
        %v652 = vmul.f32 %v620, %v651
        %v653 = vsub.f32 1.0, %v652
        %v654 = vmul.f32 %v651, %v653
        %v655 = vadd.f32 %v651, %v654
        %vm656 = vweird.f32 %v620
        %vm657 = vweird.f32 %v651
        %vm658 = vmor %vm656, %vm657
        %v659 = vsel %vm658, %v651, %v655
        %v660 = vand.u32 2147483647, %v620
        %vm661 = vcmp.eq.f32.partialorder %v660, 8.507059e+37
        %v662 = vand.u32 %v620, 2147483648
        %v663 = vor.u32 1.1754944e-38, %v662
        %v664 = vsel %vm661, %v663, %v659
        %v665 = vrcp.pop %v622
        %v666 = vmul.f32 %v622, %v665
        %v667 = vsub.f32 1.0, %v666
        %v668 = vmul.f32 %v665, %v667
        %v669 = vadd.f32 %v665, %v668
        %vm670 = vweird.f32 %v622
        %vm671 = vweird.f32 %v665
        %vm672 = vmor %vm670, %vm671
        %v673 = vsel %vm672, %v665, %v669
        %v674 = vand.u32 2147483647, %v622
        %vm675 = vcmp.eq.f32.partialorder %v674, 8.507059e+37
        %v676 = vand.u32 %v622, 2147483648
        %v677 = vor.u32 1.1754944e-38, %v676
        %v678 = vsel %vm675, %v677, %v673
        %v679 = vrcp.pop %v624
        %v680 = vmul.f32 %v624, %v679
        %v681 = vsub.f32 1.0, %v680
        %v682 = vmul.f32 %v679, %v681
        %v683 = vadd.f32 %v679, %v682
        %vm684 = vweird.f32 %v624
        %vm685 = vweird.f32 %v679
        %vm686 = vmor %vm684, %vm685
        %v687 = vsel %vm686, %v679, %v683
        %v688 = vand.u32 2147483647, %v624
        %vm689 = vcmp.eq.f32.partialorder %v688, 8.507059e+37
        %v690 = vand.u32 %v624, 2147483648
        %v691 = vor.u32 1.1754944e-38, %v690
        %v692 = vsel %vm689, %v691, %v687
        %v693 = vrcp.pop %v626
        %v694 = vmul.f32 %v626, %v693
        %v695 = vsub.f32 1.0, %v694
        %v696 = vmul.f32 %v693, %v695
        %v697 = vadd.f32 %v693, %v696
        %vm698 = vweird.f32 %v626
        %vm699 = vweird.f32 %v693
        %vm700 = vmor %vm698, %vm699
        %v701 = vsel %vm700, %v693, %v697
        %v702 = vand.u32 2147483647, %v626
        %vm703 = vcmp.eq.f32.partialorder %v702, 8.507059e+37
        %v704 = vand.u32 %v626, 2147483648
        %v705 = vor.u32 1.1754944e-38, %v704
        %v706 = vsel %vm703, %v705, %v701
        %v707 = vrcp.pop %v628
        %v708 = vmul.f32 %v628, %v707
        %v709 = vsub.f32 1.0, %v708
        %v710 = vmul.f32 %v707, %v709
        %v711 = vadd.f32 %v707, %v710
        %vm712 = vweird.f32 %v628
        %vm713 = vweird.f32 %v707
        %vm714 = vmor %vm712, %vm713
        %v715 = vsel %vm714, %v707, %v711
        %v716 = vand.u32 2147483647, %v628
        %vm717 = vcmp.eq.f32.partialorder %v716, 8.507059e+37
        %v718 = vand.u32 %v628, 2147483648
        %v719 = vor.u32 1.1754944e-38, %v718
        %v720 = vsel %vm717, %v719, %v715
        %v721 = vrcp.pop %v630
        %v722 = vmul.f32 %v630, %v721
        %v723 = vsub.f32 1.0, %v722
        %v724 = vmul.f32 %v721, %v723
        %v725 = vadd.f32 %v721, %v724
        %vm726 = vweird.f32 %v630
        %vm727 = vweird.f32 %v721
        %vm728 = vmor %vm726, %vm727
        %v729 = vsel %vm728, %v721, %v725
        %v730 = vand.u32 2147483647, %v630
        %vm731 = vcmp.eq.f32.partialorder %v730, 8.507059e+37
        %v732 = vand.u32 %v630, 2147483648
        %v733 = vor.u32 1.1754944e-38, %v732
        %v734 = vsel %vm731, %v733, %v729
        %v735 = vrcp.pop %v632
        %v736 = vmul.f32 %v632, %v735
        %v737 = vsub.f32 1.0, %v736
        %v738 = vmul.f32 %v735, %v737
        %v739 = vadd.f32 %v735, %v738
        %vm740 = vweird.f32 %v632
        %vm741 = vweird.f32 %v735
        %vm742 = vmor %vm740, %vm741
        %v743 = vsel %vm742, %v735, %v739
        %v744 = vand.u32 2147483647, %v632
        %vm745 = vcmp.eq.f32.partialorder %v744, 8.507059e+37
        %v746 = vand.u32 %v632, 2147483648
        %v747 = vor.u32 1.1754944e-38, %v746
        %v748 = vsel %vm745, %v747, %v743
        %v749 = vrcp.pop %v634
        %v750 = vmul.f32 %v634, %v749
        %v751 = vsub.f32 1.0, %v750
        %v752 = vmul.f32 %v749, %v751
        %v753 = vadd.f32 %v749, %v752
        %vm754 = vweird.f32 %v634
        %vm755 = vweird.f32 %v749
        %vm756 = vmor %vm754, %vm755
        %v757 = vsel %vm756, %v749, %v753
        %v758 = vand.u32 2147483647, %v634
        %vm759 = vcmp.eq.f32.partialorder %v758, 8.507059e+37
        %v760 = vand.u32 %v634, 2147483648
        %v761 = vor.u32 1.1754944e-38, %v760
        %v762 = vsel %vm759, %v761, %v757
        %v763 = vrcp.pop %v636
        %v764 = vmul.f32 %v636, %v763
        %v765 = vsub.f32 1.0, %v764
        %v766 = vmul.f32 %v763, %v765
        %v767 = vadd.f32 %v763, %v766
        %vm768 = vweird.f32 %v636
        %vm769 = vweird.f32 %v763
        %vm770 = vmor %vm768, %vm769
        %v771 = vsel %vm770, %v763, %v767
        %v772 = vand.u32 2147483647, %v636
        %vm773 = vcmp.eq.f32.partialorder %v772, 8.507059e+37
        %v774 = vand.u32 %v636, 2147483648
        %v775 = vor.u32 1.1754944e-38, %v774
        %v776 = vsel %vm773, %v775, %v771
        %v777 = vrcp.pop %v638
        %v778 = vmul.f32 %v638, %v777
        %v779 = vsub.f32 1.0, %v778
        %v780 = vmul.f32 %v777, %v779
        %v781 = vadd.f32 %v777, %v780
        %vm782 = vweird.f32 %v638
        %vm783 = vweird.f32 %v777
        %vm784 = vmor %vm782, %vm783
        %v785 = vsel %vm784, %v777, %v781
        %v786 = vand.u32 2147483647, %v638
        %vm787 = vcmp.eq.f32.partialorder %v786, 8.507059e+37
        %v788 = vand.u32 %v638, 2147483648
        %v789 = vor.u32 1.1754944e-38, %v788
        %v790 = vsel %vm787, %v789, %v785
        %v791 = vrcp.pop %v640
        %v792 = vmul.f32 %v640, %v791
        %v793 = vsub.f32 1.0, %v792
        %v794 = vmul.f32 %v791, %v793
        %v795 = vadd.f32 %v791, %v794
        %vm796 = vweird.f32 %v640
        %vm797 = vweird.f32 %v791
        %vm798 = vmor %vm796, %vm797
        %v799 = vsel %vm798, %v791, %v795
        %v800 = vand.u32 2147483647, %v640
        %vm801 = vcmp.eq.f32.partialorder %v800, 8.507059e+37
        %v802 = vand.u32 %v640, 2147483648
        %v803 = vor.u32 1.1754944e-38, %v802
        %v804 = vsel %vm801, %v803, %v799
        %v805 = vrcp.pop %v642
        %v806 = vmul.f32 %v642, %v805
        %v807 = vsub.f32 1.0, %v806
        %v808 = vmul.f32 %v805, %v807
        %v809 = vadd.f32 %v805, %v808
        %vm810 = vweird.f32 %v642
        %vm811 = vweird.f32 %v805
        %vm812 = vmor %vm810, %vm811
        %v813 = vsel %vm812, %v805, %v809
        %v814 = vand.u32 2147483647, %v642
        %vm815 = vcmp.eq.f32.partialorder %v814, 8.507059e+37
        %v816 = vand.u32 %v642, 2147483648
        %v817 = vor.u32 1.1754944e-38, %v816
        %v818 = vsel %vm815, %v817, %v813
        %v819 = vrcp.pop %v644
        %v820 = vmul.f32 %v644, %v819
        %v821 = vsub.f32 1.0, %v820
        %v822 = vmul.f32 %v819, %v821
        %v823 = vadd.f32 %v819, %v822
        %vm824 = vweird.f32 %v644
        %vm825 = vweird.f32 %v819
        %vm826 = vmor %vm824, %vm825
        %v827 = vsel %vm826, %v819, %v823
        %v828 = vand.u32 2147483647, %v644
        %vm829 = vcmp.eq.f32.partialorder %v828, 8.507059e+37
        %v830 = vand.u32 %v644, 2147483648
        %v831 = vor.u32 1.1754944e-38, %v830
        %v832 = vsel %vm829, %v831, %v827
        %v833 = vrcp.pop %v646
        %v834 = vmul.f32 %v646, %v833
        %v835 = vsub.f32 1.0, %v834
        %v836 = vmul.f32 %v833, %v835
        %v837 = vadd.f32 %v833, %v836
        %vm838 = vweird.f32 %v646
        %vm839 = vweird.f32 %v833
        %vm840 = vmor %vm838, %vm839
        %v841 = vsel %vm840, %v833, %v837
        %v842 = vand.u32 2147483647, %v646
        %vm843 = vcmp.eq.f32.partialorder %v842, 8.507059e+37
        %v844 = vand.u32 %v646, 2147483648
        %v845 = vor.u32 1.1754944e-38, %v844
        %v846 = vsel %vm843, %v845, %v841
        %v847 = vrcp.pop %v648
        %v848 = vmul.f32 %v648, %v847
        %v849 = vsub.f32 1.0, %v848
        %v850 = vmul.f32 %v847, %v849
        %v851 = vadd.f32 %v847, %v850
        %vm852 = vweird.f32 %v648
        %vm853 = vweird.f32 %v847
        %vm854 = vmor %vm852, %vm853
        %v855 = vsel %vm854, %v847, %v851
        %v856 = vand.u32 2147483647, %v648
        %vm857 = vcmp.eq.f32.partialorder %v856, 8.507059e+37
        %v858 = vand.u32 %v648, 2147483648
        %v859 = vor.u32 1.1754944e-38, %v858
        %v860 = vsel %vm857, %v859, %v855
        %v861 = vrcp.pop %v650
        %v862 = vmul.f32 %v650, %v861
        %v863 = vsub.f32 1.0, %v862
        %v864 = vmul.f32 %v861, %v863
        %v865 = vadd.f32 %v861, %v864
        %vm866 = vweird.f32 %v650
        %vm867 = vweird.f32 %v861
        %vm868 = vmor %vm866, %vm867
        %v869 = vsel %vm868, %v861, %v865
        %v870 = vand.u32 2147483647, %v650
        %vm871 = vcmp.eq.f32.partialorder %v870, 8.507059e+37
        %v872 = vand.u32 %v650, 2147483648
        %v873 = vor.u32 1.1754944e-38, %v872
        %v874 = vsel %vm871, %v873, %v869
        %v875 = vmul.f32 %v603, %v664
        %v876 = vmul.f32 %v604, %v678
        %v877 = vmul.f32 %v605, %v692
        %v878 = vmul.f32 %v606, %v706
        %v879 = vmul.f32 %v607, %v720
        %v880 = vmul.f32 %v608, %v734
        %v881 = vmul.f32 %v609, %v748
        %v882 = vmul.f32 %v610, %v762
        %v883 = vmul.f32 %v611, %v776
        %v884 = vmul.f32 %v612, %v790
        %v885 = vmul.f32 %v613, %v804
        %v886 = vmul.f32 %v614, %v818
        %v887 = vmul.f32 %v615, %v832
        %v888 = vmul.f32 %v616, %v846
        %v889 = vmul.f32 %v617, %v860
        %v890 = vmul.f32 %v618, %v874
        %v891 = vsel %vm506, %v456, %v875
        %v892 = vsel %vm506, %v459, %v876
        %v893 = vsel %vm506, %v462, %v877
        %v894 = vsel %vm506, %v465, %v878
        %v895 = vsel %vm506, %v468, %v879
        %v896 = vsel %vm506, %v471, %v880
        %v897 = vsel %vm506, %v474, %v881
        %v898 = vsel %vm506, %v477, %v882
        %v899 = vsel %vm506, %v480, %v883
        %v900 = vsel %vm506, %v483, %v884
        %v901 = vsel %vm506, %v486, %v885
        %v902 = vsel %vm506, %v489, %v886
        %v903 = vsel %vm506, %v492, %v887
        %v904 = vsel %vm506, %v495, %v888
        %v905 = vsel %vm506, %v498, %v889
        %v906 = vsel %vm506, %v501, %v890
        %907 = vst [vmem:[%s218] sm:$0xff] %v891
        %908 = vst [vmem:[%s218 + $0x8] sm:$0xff] %v892
        %909 = vst [vmem:[%s218 + $0x10] sm:$0xff] %v893
        %910 = vst [vmem:[%s218 + $0x18] sm:$0xff] %v894
        %911 = vst [vmem:[%s218 + $0x20] sm:$0xff] %v895
        %912 = vst [vmem:[%s218 + $0x28] sm:$0xff] %v896
        %913 = vst [vmem:[%s218 + $0x30] sm:$0xff] %v897
        %914 = vst [vmem:[%s218 + $0x38] sm:$0xff] %v898
        %915 = vst [vmem:[%s218 + $0x40] sm:$0xff] %v899
        %916 = vst [vmem:[%s218 + $0x48] sm:$0xff] %v900
        %917 = vst [vmem:[%s218 + $0x50] sm:$0xff] %v901
        %918 = vst [vmem:[%s218 + $0x58] sm:$0xff] %v902
        %919 = vst [vmem:[%s218 + $0x60] sm:$0xff] %v903
        %920 = vst [vmem:[%s218 + $0x68] sm:$0xff] %v904
        %921 = vst [vmem:[%s218 + $0x70] sm:$0xff] %v905
        %922 = vst [vmem:[%s218 + $0x78] sm:$0xff] %v906
        %s923 = sand.u32 %s137, 1
        %s924 = scalar_lea.sflag [#allocation3], %s923
        %s925 = sand.u32 %s137, 1
        %s926 = smul.addr %s925, 128
        %s927 = scalar_lea.vmem [#allocation2], %s926
        // Predicated region
        $region41: #{tpu_custom_call.1} parent=39 // pred_check
          %p928 = pneg %p147
        $region42: #{tpu_custom_call.1} parent=39 // pred_check_branch
          %930 = sbr.rel (%p928) target = $region44
        $region43: #{tpu_custom_call.1} parent=39 // pred_region
          %s931 = smul.u32 16, %s19
          %933 = vsyncadd %s924, 0
          %s934 = smul.addr %s931, 8
          %s935 = scalar_lea.hbm %s5, %s934
          %s936 = sshll.u32 %s927, 4
          %s937 = int_to_ptr.vmem [resolvable:$true] %s936
          %s938 = sshll.u32 %s935, 4
          %s939 = int_to_ptr.hbm [resolvable:$true] %s938
          %944 = dma.vmem_to_hbm [thread:$0]  %s937, 2048, %s939, %s924, 128, 128, 8
        $region44: #{tpu_custom_call.1} parent=39 // pred_fallthru
          _
      $region40: #{tpu_custom_call.1} parent=5 // pred_fallthru
        _
      %p945 = scmp.le.s32.totalorder 2, %s14
      // Predicated region
      $region45: #{tpu_custom_call.1} parent=5 // pred_check
        %p946 = pneg %p945
      $region46: #{tpu_custom_call.1} parent=5 // pred_check_branch
        %948 = sbr.rel (%p946) target = $region48
      $region47: #{tpu_custom_call.1} parent=5 // pred_region
        %s949 = ssub.s32 %s14, 2
        // Predicated region
        $region49: #{tpu_custom_call.1} parent=47 // pred_check
          %p950 = pneg %p153
        $region50: #{tpu_custom_call.1} parent=47 // pred_check_branch
          %952 = sbr.rel (%p950) target = $region52
        $region51: #{tpu_custom_call.1} parent=47 // pred_region
          %s953 = sand.u32 %s138, 1
          %s954 = scalar_lea.sflag [#allocation3], %s953
          %s955 = sand.u32 %s138, 1
          %s956 = smul.addr %s955, 128
          %s957 = scalar_lea.vmem [#allocation2], %s956
          %959 = dma.done %s954, 2048
        $region52: #{tpu_custom_call.1} parent=47 // pred_fallthru
          _
      $region48: #{tpu_custom_call.1} parent=5 // pred_fallthru
        _
    $region6: #{tpu_custom_call.1} parent=1 // loop_footer
      %s18 = sadd.s32 1, %s14
    $region7: #{tpu_custom_call.1} parent=1 // loop_footer_branch
      %13 = sbr.rel target = $region3
    $region8: #{tpu_custom_call.1} parent=1 // loop_exit
      _
    %960 = vsyncpa [#allocation3], 1
    %s961 = scalar_lea.sflag [#allocation3], 1
    %962 = vsyncpa %s961, 1

</llo_original>
